<compile_context>
chip_gen: v7x
topology: tpu7x:2x2x1
jax: 0.10.0
libtpu: 0.0.40
codegen_flags: <defaults>
</compile_context>

<pallas_src>
import functools

import jax
import jax.numpy as jnp
from jax.experimental import pallas as pl
from jax.experimental.pallas import tpu as pltpu

_NEG_INF = -1e30
_VMEM_LIMIT = 32 * 1024 * 1024  # explicit scoped-VMEM limit (safe on v5e/v6e/v7x)


def _pick_tile(n, cap, align):
    """Largest tile <= cap that divides n and is a multiple of `align`,
    falling back to the full extent (always a legal block dim)."""
    if n <= cap:
        return n
    c = (cap // align) * align
    while c >= align:
        if n % c == 0:
            return c
        c -= align
    return n


# --------------------------------------------------------------------------
# Kernel 1: row-tiled dense linear  y = x @ W + b   (W stored as (in, out))
# --------------------------------------------------------------------------
def _linear_kernel(x_ref, w_ref, b_ref, o_ref):
    y = jnp.dot(x_ref[...], w_ref[...], preferred_element_type=jnp.float32)
    o_ref[...] = (y + b_ref[...]).astype(o_ref.dtype)


def linear(x2d, w, bias, *, row_tile=256):
    """x2d: (N, E_in), w: (E_in, E_out), bias: (1, E_out) -> (N, E_out)."""
    n, e_in = x2d.shape
    e_out = w.shape[1]
    tn = _pick_tile(n, row_tile, 8)
    return pl.pallas_call(
        _linear_kernel,
        out_shape=jax.ShapeDtypeStruct((n, e_out), x2d.dtype),
        grid_spec=pltpu.PrefetchScalarGridSpec(
            num_scalar_prefetch=0,
            grid=(n // tn,),
            in_specs=[
                pl.BlockSpec((tn, e_in), lambda i: (i, 0)),
                pl.BlockSpec((e_in, e_out), lambda i: (0, 0)),  # weight resident
                pl.BlockSpec((1, e_out), lambda i: (0, 0)),     # bias resident
            ],
            out_specs=pl.BlockSpec((tn, e_out), lambda i: (i, 0)),
        ),
        compiler_params=pltpu.CompilerParams(
            dimension_semantics=("parallel",),
            vmem_limit_bytes=_VMEM_LIMIT),
    )(x2d, w, bias)


# --------------------------------------------------------------------------
# Kernel 2: flash-style attention (all heads per batch, online softmax over S)
# --------------------------------------------------------------------------
def _flash_attn_kernel(q_ref, k_ref, v_ref, mask_ref, o_ref,
                       m_sc, l_sc, acc_sc, *, scaling):
    si = pl.program_id(2)

    @pl.when(si == 0)
    def _init():
        m_sc[...] = jnp.full_like(m_sc, _NEG_INF)
        l_sc[...] = jnp.zeros_like(l_sc)
        acc_sc[...] = jnp.zeros_like(acc_sc)

    q = q_ref[0]                                        # (H, TT, D)
    k = k_ref[0]                                        # (H, TS, D)
    v = v_ref[0]                                        # (H, TS, D)

    # Batched QK^T over heads; contraction over last dims -> no K transpose.
    s = jnp.einsum("htd,hsd->hts", q, k,
                   preferred_element_type=jnp.float32)  # (H, TT, TS) f32
    s = s * scaling + mask_ref[0, 0]                    # mask broadcasts over H

    # Online softmax (all math in f32 -- required on v5e, cheap everywhere).
    m_prev = m_sc[...]
    m_new = jnp.maximum(m_prev, jnp.max(s, axis=-1, keepdims=True))
    alpha = jnp.exp(m_prev - m_new)
    p = jnp.exp(s - m_new)
    l_sc[...] = alpha * l_sc[...] + jnp.sum(p, axis=-1, keepdims=True)
    pv = jnp.einsum("hts,hsd->htd", p.astype(v.dtype), v,
                    preferred_element_type=jnp.float32)
    acc_sc[...] = alpha * acc_sc[...] + pv
    m_sc[...] = m_new

    @pl.when(si == pl.num_programs(2) - 1)
    def _finalize():
        # Fold 1/sum into the small (H, TT, D) epilogue (EUP reciprocal)
        # instead of dividing the (H, TT, TS) probability matrix.
        inv_l = pl.reciprocal(l_sc[...], approx=True)
        o_ref[0] = (acc_sc[...] * inv_l).astype(o_ref.dtype)


def sdpa_flash(q, k, v, mask, scaling, *, t_tile=256, s_tile=512):
    """q,k,v: (B, H, T/S, D); mask: (B, 1, T, S) additive f32. Returns (B,H,T,D)."""
    b, h, t, d = q.shape
    s = k.shape[2]
    tt = _pick_tile(t, t_tile, 8)
    ts = _pick_tile(s, s_tile, 128)
    kernel = functools.partial(_flash_attn_kernel, scaling=scaling)
    return pl.pallas_call(
        kernel,
        out_shape=jax.ShapeDtypeStruct((b, h, t, d), q.dtype),
        grid_spec=pltpu.PrefetchScalarGridSpec(
            num_scalar_prefetch=0,
            grid=(b, t // tt, s // ts),
            in_specs=[
                pl.BlockSpec((1, h, tt, d), lambda bi, ti, si: (bi, 0, ti, 0)),
                pl.BlockSpec((1, h, ts, d), lambda bi, ti, si: (bi, 0, si, 0)),
                pl.BlockSpec((1, h, ts, d), lambda bi, ti, si: (bi, 0, si, 0)),
                pl.BlockSpec((1, 1, tt, ts), lambda bi, ti, si: (bi, 0, ti, si)),
            ],
            out_specs=pl.BlockSpec((1, h, tt, d),
                                   lambda bi, ti, si: (bi, 0, ti, 0)),
            scratch_shapes=[
                pltpu.VMEM((h, tt, 1), jnp.float32),   # running max
                pltpu.VMEM((h, tt, 1), jnp.float32),   # running denom
                pltpu.VMEM((h, tt, d), jnp.float32),   # output accumulator
            ],
        ),
        compiler_params=pltpu.CompilerParams(
            dimension_semantics=("parallel", "parallel", "arbitrary"),
            vmem_limit_bytes=_VMEM_LIMIT),
    )(q, k, v, mask)


# --------------------------------------------------------------------------
# Kernel 3: attention with materialized probabilities (output_attentions=True)
# --------------------------------------------------------------------------
def _attn_probs_kernel(q_ref, k_ref, v_ref, mask_ref, o_ref, p_ref, *, scaling):
    q = q_ref[0]
    k = k_ref[0]
    v = v_ref[0]
    s = jnp.einsum("htd,hsd->hts", q, k, preferred_element_type=jnp.float32)
    s = s * scaling + mask_ref[0, 0]
    s = s - jnp.max(s, axis=-1, keepdims=True)
    e = jnp.exp(s)
    p = e / jnp.sum(e, axis=-1, keepdims=True)
    p_ref[0] = p.astype(p_ref.dtype)
    o_ref[0] = jnp.einsum("hts,hsd->htd", p.astype(v.dtype), v,
                          preferred_element_type=jnp.float32).astype(o_ref.dtype)


def sdpa_with_probs(q, k, v, mask, scaling):
    b, h, t, d = q.shape
    s = k.shape[2]
    kernel = functools.partial(_attn_probs_kernel, scaling=scaling)
    out, probs = pl.pallas_call(
        kernel,
        out_shape=(jax.ShapeDtypeStruct((b, h, t, d), q.dtype),
                   jax.ShapeDtypeStruct((b, h, t, s), q.dtype)),  # probs in activation dtype
        grid_spec=pltpu.PrefetchScalarGridSpec(
            num_scalar_prefetch=0,
            grid=(b,),
            in_specs=[
                pl.BlockSpec((1, h, t, d), lambda bi: (bi, 0, 0, 0)),
                pl.BlockSpec((1, h, s, d), lambda bi: (bi, 0, 0, 0)),
                pl.BlockSpec((1, h, s, d), lambda bi: (bi, 0, 0, 0)),
                pl.BlockSpec((1, 1, t, s), lambda bi: (bi, 0, 0, 0)),
            ],
            out_specs=[
                pl.BlockSpec((1, h, t, d), lambda bi: (bi, 0, 0, 0)),
                pl.BlockSpec((1, h, t, s), lambda bi: (bi, 0, 0, 0)),
            ],
        ),
        compiler_params=pltpu.CompilerParams(
            dimension_semantics=("parallel",),
            vmem_limit_bytes=_VMEM_LIMIT),
    )(q, k, v, mask)
    return out, probs


# --------------------------------------------------------------------------
# StructAttention forward (self-attention path)
# --------------------------------------------------------------------------
def struct_attention_forward(hidden_states, params, attention_mask, num_heads,
                             *, output_attentions=False, compute_dtype=None):
    """hidden_states: (B, T, E); attention_mask: (B, 1, T, T) additive or None.

    compute_dtype: optionally jnp.bfloat16 on v6e/v7x -- matmul operands are
    cast, accumulation and softmax stay f32 in-kernel.

    Returns (attn_output (B,T,E), attn_weights (B,H,T,T) or None, past_key_value=None).
    """
    b, t, e = hidden_states.shape
    if e % num_heads != 0:
        raise ValueError("embed_dim must be divisible by num_heads")
    d = e // num_heads
    scaling = d ** (-0.5)

    # Fused QKV weights: read x once, one wide (E, 3E) matmul.
    if "qkv_w" in params:
        qkv_w, qkv_b = params["qkv_w"], params["qkv_b"]
    else:
        qkv_w = jnp.concatenate([params["q_w"], params["k_w"], params["v_w"]], axis=1)
        qkv_b = jnp.concatenate([params["q_b"], params["k_b"], params["v_b"]], axis=1)
    o_w, o_b = params["o_w"], params["o_b"]

    x2d = hidden_states.reshape(b * t, e)
    if compute_dtype is not None:
        x2d = x2d.astype(compute_dtype)
        qkv_w = qkv_w.astype(compute_dtype)
        qkv_b = qkv_b.astype(compute_dtype)
        o_w = o_w.astype(compute_dtype)
        o_b = o_b.astype(compute_dtype)

    qkv = linear(x2d, qkv_w, qkv_b)                         # (B*T, 3E)
    q2d, k2d, v2d = qkv[:, :e], qkv[:, e:2 * e], qkv[:, 2 * e:]

    def to_heads(x):  # (B*T, E) -> (B, H, T, D)
        # TODO(synk): fold this head split/transpose into the attention
        #             BlockSpec index_map to avoid the extra HBM round trip.
        return x.reshape(b, t, num_heads, d).transpose(0, 2, 1, 3)

    qh, kh, vh = to_heads(q2d), to_heads(k2d), to_heads(v2d)

    if attention_mask is None:
        attention_mask = jnp.zeros((b, 1, t, t), jnp.float32)
    attention_mask = attention_mask.astype(jnp.float32)

    if output_attentions:
        attn_out, attn_w = sdpa_with_probs(qh, kh, vh, attention_mask, scaling)
    else:
        attn_out = sdpa_flash(qh, kh, vh, attention_mask, scaling)
        attn_w = None

    # (B, H, T, D) -> (B*T, E), output projection, back to (B, T, E).
    attn_2d = attn_out.transpose(0, 2, 1, 3).reshape(b * t, e)
    out = linear(attn_2d, o_w, o_b).reshape(b, t, e)

    if compute_dtype is not None:
        out = out.astype(hidden_states.dtype)
        if attn_w is not None:
            attn_w = attn_w.astype(jnp.float32)
    return out, attn_w, None


# --------------------------------------------------------------------------
# Pure-JAX reference for validation
# --------------------------------------------------------------------------
def reference_forward(hidden_states, params, attention_mask, num_heads):
    b, t, e = hidden_states.shape
    d = e // num_heads
    scaling = d ** (-0.5)
    q = hidden_states @ params["q_w"] + params["q_b"]
    k = hidden_states @ params["k_w"] + params["k_b"]
    v = hidden_states @ params["v_w"] + params["v_b"]

    def heads(x):
        return x.reshape(b, t, num_heads, d).transpose(0, 2, 1, 3)

    qh, kh, vh = heads(q) * scaling, heads(k), heads(v)
    s = jnp.einsum("bhtd,bhsd->bhts", qh, kh) + attention_mask
    p = jax.nn.softmax(s, axis=-1)
    o = jnp.einsum("bhts,bhsd->bhtd", p, vh)
    o = o.transpose(0, 2, 1, 3).reshape(b, t, e)
    return o @ params["o_w"] + params["o_b"], p


# --------------------------------------------------------------------------
if __name__ == "__main__":
    # Small shapes consistent with the module:
    B, T, E, H = 2, 8, 32, 4   # batch, seq, embed_dim, num_heads
    dtype = jnp.float32

    key = jax.random.PRNGKey(0)
    keys = jax.random.split(key, 10)

    def winit(k):
        return jax.random.normal(k, (E, E), dtype) * 0.05

    params = {
        "q_w": winit(keys[0]), "q_b": jax.random.normal(keys[1], (1, E), dtype) * 0.01,
        "k_w": winit(keys[2]), "k_b": jax.random.normal(keys[3], (1, E), dtype) * 0.01,
        "v_w": winit(keys[4]), "v_b": jax.random.normal(keys[5], (1, E), dtype) * 0.01,
        "o_w": winit(keys[6]), "o_b": jax.random.normal(keys[7], (1, E), dtype) * 0.01,
    }

    hidden_states = jax.random.normal(keys[8], (B, T, E), dtype)

    # Additive attention mask (B, 1, T, T): mask out the last 2 source tokens
    # of batch 1 with a large negative value (HF convention).
    mask = jnp.zeros((B, 1, T, T), dtype)
    mask = mask.at[1, :, :, -2:].set(-1e9)

    # Main inference path: flash-style attention, no probability materialization.
    out, attn_w, _ = struct_attention_forward(hidden_states, params, mask, H)
    out = jax.block_until_ready(out)
    assert attn_w is None

    # output_attentions=True path (exercises the probability-emitting kernel).
    out2, attn_w2, _ = struct_attention_forward(
        hidden_states, params, mask, H, output_attentions=True)
    out2 = jax.block_until_ready(out2)
    attn_w2 = jax.block_until_ready(attn_w2)

    ref_out, ref_w = reference_forward(hidden_states, params, mask, H)
    assert jnp.allclose(out, ref_out, atol=1e-3, rtol=1e-3), "flash output mismatch"
    assert jnp.allclose(out2, ref_out, atol=1e-4, rtol=1e-4), "probs-path output mismatch"
    assert jnp.allclose(attn_w2, ref_w, atol=1e-5, rtol=1e-4), "weights mismatch"

    print("KERNEL_OK")
</pallas_src>

<mosaic_0001>
module attributes {stable_mosaic.version = 11 : i64} {
  func.func @_linear_kernel(%arg0: i32, %arg1: memref<16x32xf32, #tpu.memory_space<vmem>>, %arg2: memref<32x96xf32, #tpu.memory_space<vmem>>, %arg3: memref<1x96xf32, #tpu.memory_space<vmem>>, %arg4: memref<16x96xf32, #tpu.memory_space<vmem>>) attributes {dimension_semantics = [#tpu.dimension_semantics<parallel>], iteration_bounds = array<i64: 1>, scalar_prefetch = 0 : i64, scratch_operands = 0 : i64, tpu.core_type = #tpu.core_type<tc>, window_params = [{transform_indices = @transform_0, window_bounds = array<i64: 16, 32>}, {pipeline_mode = #tpu.pipeline_mode<synchronous>, transform_indices = @transform_1, window_bounds = array<i64: 32, 96>}, {pipeline_mode = #tpu.pipeline_mode<synchronous>, transform_indices = @transform_2, window_bounds = array<i64: 1, 96>}, {transform_indices = @transform_3, window_bounds = array<i64: 16, 96>}]} {
    %c0 = arith.constant 0 : index
    %c0_0 = arith.constant 0 : index
    %0 = vector.load %arg1[%c0, %c0_0] : memref<16x32xf32, #tpu.memory_space<vmem>>, vector<16x32xf32>
    %c0_1 = arith.constant 0 : index
    %c0_2 = arith.constant 0 : index
    %1 = vector.load %arg2[%c0_1, %c0_2] : memref<32x96xf32, #tpu.memory_space<vmem>>, vector<32x96xf32>
    %cst = arith.constant dense<0.000000e+00> : vector<16x96xf32>
    %2 = tpu.matmul %0, %1, %cst {dimension_numbers = #tpu.dot_dimension_numbers<[1], [0], [0], [1], [0, 0, 1, 1], [], []>} : vector<16x32xf32>, vector<32x96xf32>, vector<16x96xf32> -> vector<16x96xf32>
    %c0_3 = arith.constant 0 : index
    %c0_4 = arith.constant 0 : index
    %3 = vector.load %arg3[%c0_3, %c0_4] : memref<1x96xf32, #tpu.memory_space<vmem>>, vector<1x96xf32>
    %4 = vector.broadcast %3 : vector<1x96xf32> to vector<16x96xf32>
    %5 = arith.addf %2, %4 : vector<16x96xf32>
    %c0_5 = arith.constant 0 : index
    %c0_6 = arith.constant 0 : index
    %6 = vector.load %arg4[%c0_5, %c0_6] : memref<16x96xf32, #tpu.memory_space<vmem>>, vector<16x96xf32>
    tpu.vector_store %arg4[%c0_5, %c0_6], %5 {strides = array<i32>} : memref<16x96xf32, #tpu.memory_space<vmem>>, vector<16x96xf32>,
    return
  }
  func.func @transform_0(%arg0: i32) -> (i32, i32) {
    %c0_i32 = arith.constant 0 : i32
    %c0_i32_0 = arith.constant 0 : i32
    return %arg0, %c0_i32 : i32, i32
  }
  func.func @transform_1(%arg0: i32) -> (i32, i32) {
    %c0_i32 = arith.constant 0 : i32
    %c0_i32_0 = arith.constant 0 : i32
    %c0_i32_1 = arith.constant 0 : i32
    return %c0_i32, %c0_i32_0 : i32, i32
  }
  func.func @transform_2(%arg0: i32) -> (i32, i32) {
    %c0_i32 = arith.constant 0 : i32
    %c0_i32_0 = arith.constant 0 : i32
    %c0_i32_1 = arith.constant 0 : i32
    return %c0_i32, %c0_i32_0 : i32, i32
  }
  func.func @transform_3(%arg0: i32) -> (i32, i32) {
    %c0_i32 = arith.constant 0 : i32
    %c0_i32_0 = arith.constant 0 : i32
    return %arg0, %c0_i32 : i32, i32
  }
}

</mosaic_0001>

<llo_original>
// kernel: tpu_custom_call.1
$region0: #{tpu_custom_call.1}
  #allocation0 [shape = 'u32[]', space=smem, size = 0x4, offset = 0x4, fixed_abs, tag = 'smem constant byte address 0x4 - core index']
  #allocation1 [shape = 'u32[144,128]{1,0:T(1,128)}', space=vmem, size = 0x12000, scoped, tag = 'internal scratch']
  %s0 = inlined_call_operand.hbm [shape: f32[16,32], index: 0, kind: input, shape index: {}]
  %s1 = inlined_call_operand.hbm [shape: f32[32,96], index: 1, kind: input, shape index: {}]
  %s2 = inlined_call_operand.vmem [shape: f32[1,96], index: 2, kind: input, shape index: {}]
  %s3 = inlined_call_operand.hbm [shape: f32[16,96], index: 3, kind: output, shape index: {}]
  %s4 = sld [smem:[#allocation0]]
  $region30: #{tpu_custom_call.1} parent=0
    _
  %s6 = ssub.s32 1, %s4
  %s7 = scalar_select 0, %s6, %s4
  $region1: #{tpu_custom_call.1} parent=0
    #allocation2 [shape = 'u8[8192]{0}', space=vmem, size = 0x2000, scoped, tag = 'input window, operand 0, single buffered']
    #allocation3 [shape = 's32[1]{0}', space=sflag, size = 0x4, scoped, tag = 'scoped memory for tpu_custom_call.1']
    #allocation4 [shape = 's32[1]{0}', space=sflag, size = 0x4, scoped, tag = 'scoped memory for tpu_custom_call.1']
    #allocation5 [shape = 'u8[16384]{0}', space=vmem, size = 0x4000, scoped, tag = 'input window, operand 1, single buffered']
    #allocation6 [shape = 's32[1]{0}', space=sflag, size = 0x4, scoped, tag = 'scoped memory for tpu_custom_call.1']
    #allocation7 [shape = 'u8[8192]{0}', space=vmem, size = 0x2000, scoped, tag = 'output window, operand 0, single buffered']
    %8 = vsyncpa [#allocation3], 0
    %9 = vsyncpa [#allocation6], 0
    %10 = vsyncpa [#allocation4], 0
    // Predicated region
    $region2: #{tpu_custom_call.1} parent=1 // pred_check
      _
    $region3: #{tpu_custom_call.1} parent=1 // pred_check_branch
      %12 = sbr.rel (0) target = $region5
    $region4: #{tpu_custom_call.1} parent=1 // pred_region
      %s14 = ssub.s32 256, 256
      %15 = vsyncadd [#allocation3], %s14
      %s16 = sshll.u32 [#allocation2], 4
      %s17 = int_to_ptr.vmem [resolvable:$true] %s16
      %22 = dma.hbm_to_vmem [thread:$0]  %s0, 256, %s17, [#allocation3], 128, 128, 8
    $region5: #{tpu_custom_call.1} parent=1 // pred_fallthru
      _
    // Predicated region
    $region6: #{tpu_custom_call.1} parent=1 // pred_check
      _
    $region7: #{tpu_custom_call.1} parent=1 // pred_check_branch
      %24 = sbr.rel (0) target = $region9
    $region8: #{tpu_custom_call.1} parent=1 // pred_region
      %s26 = ssub.s32 512, 512
      %27 = vsyncadd [#allocation6], %s26
      %s28 = sshll.u32 [#allocation5], 4
      %s29 = int_to_ptr.vmem [resolvable:$true] %s28
      %34 = dma.hbm_to_vmem [thread:$0]  %s1, 512, %s29, [#allocation6], 128, 128, 8
    $region9: #{tpu_custom_call.1} parent=1 // pred_fallthru
      _
    // Predicated region
    $region10: #{tpu_custom_call.1} parent=1 // pred_check
      _
    $region11: #{tpu_custom_call.1} parent=1 // pred_check_branch
      %36 = sbr.rel (0) target = $region13
    $region12: #{tpu_custom_call.1} parent=1 // pred_region
      _
    $region13: #{tpu_custom_call.1} parent=1 // pred_fallthru
      _
    // Predicated region
    $region14: #{tpu_custom_call.1} parent=1 // pred_check
      _
    $region15: #{tpu_custom_call.1} parent=1 // pred_check_branch
      %38 = sbr.rel (0) target = $region17
    $region16: #{tpu_custom_call.1} parent=1 // pred_region
      %39 = dma.done [#allocation3], 256
    $region17: #{tpu_custom_call.1} parent=1 // pred_fallthru
      _
    // Predicated region
    $region18: #{tpu_custom_call.1} parent=1 // pred_check
      _
    $region19: #{tpu_custom_call.1} parent=1 // pred_check_branch
      %41 = sbr.rel (0) target = $region21
    $region20: #{tpu_custom_call.1} parent=1 // pred_region
      %42 = dma.done [#allocation6], 512
    $region21: #{tpu_custom_call.1} parent=1 // pred_fallthru
      _
    %v43 = vld [vmem:[#allocation2] sm:$0xff]
    %v44 = vld [vmem:[#allocation2 + $0x8] sm:$0xff]
    %v45 = vld [vmem:[#allocation5] sm:$0xff]
    %v46 = vld [vmem:[#allocation5 + $0x8] sm:$0xff]
    %v47 = vld [vmem:[#allocation5 + $0x10] sm:$0xff]
    %v48 = vld [vmem:[#allocation5 + $0x18] sm:$0xff]
    %v49 = vld [vmem:[%s2] sm:$0x1]
    %v51 = vlaneseq
    %v52 = vshrl.u32 %v51, 7
    %v53 = vsub.s32 0, %v52
    %v54 = vrot.slane %v49, %v53
    %vm56 = vcmask 261120
    %v58 = vsel %vm56, %v43, 0
    %v61 = vsel %vm56, %v44, 0
    %63 = vmatprep.subr.mxu0 0.0
    %64 = vmatpush1.msra.mxu0 %v45
    %65 = vmatprep.subr.mxu0 0.0
    %66 = vmatpush1.msra.mxu0 %v46
    %67 = vmatprep.subr.mxu0 0.0
    %68 = vmatpush1.msra.mxu0 %v47
    %69 = vmatprep.subr.mxu0 0.0
    %70 = vmatpush1.msra.mxu0 %v48
    %71 = vmatprep.subr.mxu0 0.0
    %72 = vmatpush1.msra.mxu0 0.0
    %73 = vmatprep.subr.mxu0 0.0
    %74 = vmatpush1.msra.mxu0 0.0
    %75 = vmatprep.subr.mxu0 0.0
    %76 = vmatpush1.msra.mxu0 0.0
    %77 = vmatprep.subr.mxu0 0.0
    %78 = vmatpush1.msra.mxu0 0.0
    %79 = vmatprep.subr.mxu0 0.0
    %80 = vmatpush1.msra.mxu0 0.0
    %81 = vmatprep.subr.mxu0 0.0
    %82 = vmatpush1.msra.mxu0 0.0
    %83 = vmatprep.subr.mxu0 0.0
    %84 = vmatpush1.msra.mxu0 0.0
    %85 = vmatprep.subr.mxu0 0.0
    %86 = vmatpush1.msra.mxu0 0.0
    %87 = vmatprep.subr.mxu0 0.0
    %88 = vmatpush1.msra.mxu0 0.0
    %89 = vmatprep.subr.mxu0 0.0
    %90 = vmatpush1.msra.mxu0 0.0
    %91 = vmatprep.subr.mxu0 0.0
    %92 = vmatpush1.msra.mxu0 0.0
    %93 = vmatprep.subr.mxu0 0.0
    %94 = vmatpush1.msra.mxu0 0.0
    %95 = vmatprep.subr.mxu0 0.0
    %96 = vmatpush1.msra.mxu0 0.0
    %97 = vmatprep.subr.mxu0 0.0
    %98 = vmatpush1.msra.mxu0 0.0
    %99 = vmatprep.subr.mxu0 0.0
    %100 = vmatpush1.msra.mxu0 0.0
    %101 = vmatprep.subr.mxu0 0.0
    %102 = vmatpush1.msra.mxu0 0.0
    %103 = vmatprep.subr.mxu0 0.0
    %104 = vmatpush1.msra.mxu0 0.0
    %105 = vmatprep.subr.mxu0 0.0
    %106 = vmatpush1.msra.mxu0 0.0
    %107 = vmatprep.subr.mxu0 0.0
    %108 = vmatpush1.msra.mxu0 0.0
    %109 = vmatprep.subr.mxu0 0.0
    %110 = vmatpush1.msra.mxu0 0.0
    %111 = vmatprep.subr.mxu0 0.0
    %112 = vmatpush1.msra.mxu0 0.0
    %113 = vmatprep.subr.mxu0 0.0
    %114 = vmatpush1.msra.mxu0 0.0
    %115 = vmatprep.subr.mxu0 0.0
    %116 = vmatpush1.msra.mxu0 0.0
    %117 = vmatprep.subr.mxu0 0.0
    %118 = vmatpush1.msra.mxu0 0.0
    %119 = vmatprep.subr.mxu0 0.0
    %120 = vmatpush1.msra.mxu0 0.0
    %121 = vmatprep.subr.mxu0 0.0
    %122 = vmatpush1.msra.mxu0 0.0
    %123 = vmatprep.subr.mxu0 0.0
    %124 = vmatpush1.msra.mxu0 0.0
    %125 = vmatprep.subr.mxu0 0.0
    %126 = vmatpush1.msra.mxu0 0.0
    %127 = vmatprep.mubr.f32.mxu0 0.0
    %128 = vmatmul.mubr.f32.gmra.mrb[0].mxu0 %v58
    %v129 = vpop.f32.mrb[0].mxu0
    %v130 = vadd.f32 %v54, %v129
    %v131 = vpop.f32.mrb[0].mxu0
    %132 = vmatprep.mubr.f32.mxu0 0.0
    %133 = vmatmul.mubr.f32.gmra.mrb[0].mxu0 %v61
    %v134 = vpop.f32.mrb[0].mxu0
    %v135 = vadd.f32 %v54, %v134
    %v136 = vpop.f32.mrb[0].mxu0
    %137 = vdwg.mxu0
    %vm138 = vcmask 785408
    %139 = vst.msk [vmem:[#allocation7] sm:$0xff] %vm138, %v130
    %140 = vst.msk [vmem:[#allocation7 + $0x8] sm:$0xff] %vm138, %v135
    // Predicated region
    $region22: #{tpu_custom_call.1} parent=1 // pred_check
      _
    $region23: #{tpu_custom_call.1} parent=1 // pred_check_branch
      %142 = sbr.rel (0) target = $region25
    $region24: #{tpu_custom_call.1} parent=1 // pred_region
      %s144 = ssub.s32 256, 256
      %145 = vsyncadd [#allocation4], %s144
      %s146 = sshll.u32 [#allocation7], 4
      %s147 = int_to_ptr.vmem [resolvable:$true] %s146
      %152 = dma.vmem_to_hbm [thread:$0]  %s147, 256, %s3, [#allocation4], 128, 128, 8
    $region25: #{tpu_custom_call.1} parent=1 // pred_fallthru
      _
    // Predicated region
    $region26: #{tpu_custom_call.1} parent=1 // pred_check
      _
    $region27: #{tpu_custom_call.1} parent=1 // pred_check_branch
      %154 = sbr.rel (0) target = $region29
    $region28: #{tpu_custom_call.1} parent=1 // pred_region
      %155 = dma.done [#allocation4], 256
    $region29: #{tpu_custom_call.1} parent=1 // pred_fallthru
      _
    %156 = vsyncpa [#allocation3], 1
    %157 = vsyncpa [#allocation6], 1
    %158 = vsyncpa [#allocation4], 1

</llo_original>
